<compile_context>
chip_gen: v6e
topology: v6e:2x2x1
jax: 0.10.0
libtpu: 0.0.40
codegen_flags: <defaults>
</compile_context>

<pallas_src>
import jax
import jax.numpy as jnp
from jax.experimental import pallas as pl
from jax.experimental.pallas import tpu as pltpu

_BN_EPS = 1e-5
_LANE = 128
_N_PAR = 2                            # phase-1 partial-stats shards (v7x: 2 TCs)
_TILE_S2_MAX = 512                    # phase-2 spatial tile (lane dim)
_TILE_S1_MAX = 2048                   # phase-1 spatial tile (streaming reduce)
_PHASE1_VMEM_BUDGET = 8 * 1024 * 1024
_PHASE2_VMEM_BUDGET = 12 * 1024 * 1024
_VMEM_LIMIT = 32 * 1024 * 1024


def _round_up(x, m):
    return ((x + m - 1) // m) * m


def _stats_kernel(x_ref, stats_ref):
    """Accumulate per-channel [sum | sum(x^2)] over the (batch, spatial) axes."""
    @pl.when((pl.program_id(1) == 0) & (pl.program_id(2) == 0))
    def _():
        stats_ref[...] = jnp.zeros_like(stats_ref)

    x = x_ref[...].astype(jnp.float32)                          # (4C, tile_s1)
    stats_ref[:, 0:1] += jnp.sum(x, axis=1, keepdims=True)      # (4C, 1)
    stats_ref[:, 1:2] += jnp.sum(x * x, axis=1, keepdims=True)  # (4C, 1)


def _proj_kernel(x_ref, w_ref, b_ref, o_ref):
    """o = W' @ x + bias  (BatchNorm already folded); output is NCHW-contiguous."""
    acc = jnp.dot(w_ref[...], x_ref[...], preferred_element_type=jnp.float32)
    o_ref[...] = (acc + b_ref[...]).astype(o_ref.dtype)


def patch_merging(x, gamma, beta, w_pointwise):
    """x: (B, C, H, W) NCHW.  Returns (B, out_dim, H//2, W//2) NCHW."""
    B, C, H, W = x.shape
    H2, W2 = H // 2, W // 2
    C4 = 4 * C
    S = H2 * W2
    out_dim = w_pointwise.shape[0]
    xb = jnp.dtype(x.dtype).itemsize

    # ---- tile selection (spatial is the lane dim of every block) ----------
    s128 = _round_up(S, _LANE)
    tile_s2 = min(_TILE_S2_MAX, s128)

    def est_phase2(t):
        return (2 * C4 * t * xb            # streamed merged tile (double-buffered)
                + 2 * out_dim * C4 * xb    # folded weight (resident)
                + 2 * out_dim * 4          # bias (resident)
                + 2 * out_dim * t * xb)    # output tile (double-buffered)

    while tile_s2 > _LANE and est_phase2(tile_s2) > _PHASE2_VMEM_BUDGET:
        tile_s2 //= 2

    # Phase 1 streams only the input block, so it can afford a bigger tile
    # (fewer ~0.35 us grid steps).  Keep it a multiple of tile_s2.
    tile_s1 = tile_s2
    while (tile_s1 * 2 <= _TILE_S1_MAX
           and 2 * C4 * (tile_s1 * 2) * xb <= _PHASE1_VMEM_BUDGET
           and tile_s1 * _N_PAR < s128):
        tile_s1 *= 2

    s_pad = _round_up(S, _N_PAR * tile_s1)   # multiple of tile_s2 as well
    n_s1 = s_pad // tile_s1
    s1_half = n_s1 // _N_PAR
    n_s2 = s_pad // tile_s2

    vmem_limit2 = max(_VMEM_LIMIT, min(2 * est_phase2(tile_s2), 48 * 1024 * 1024))

    # ---- glue: fused 2x2 merge -> channel-major slab (B, 4C, S), one pass.
    # Channel order (dw, dh, c) matches torch.cat([x0, x1, x2, x3], dim=1)
    # with x0=(0::2,0::2), x1=(1::2,0::2), x2=(0::2,1::2), x3=(1::2,1::2).
    # allow_input_fusion on the pallas_calls lets XLA fold this transpose into
    # the kernels' operand reads so the slab need not be materialized in HBM.
    x6 = x.reshape(B, C, H2, 2, W2, 2)
    merged = jnp.transpose(x6, (0, 5, 3, 1, 2, 4)).reshape(B, C4, S)
    if s_pad != S:
        merged = jnp.pad(merged, ((0, 0), (0, 0), (0, s_pad - S)))

    # ---- phase 1: per-channel sum / sum(x^2), _N_PAR parallel partials -----
    partial_stats = pl.pallas_call(
        _stats_kernel,
        out_shape=jax.ShapeDtypeStruct((_N_PAR, C4, 2), jnp.float32),
        grid=(_N_PAR, B, s1_half),
        in_specs=[pl.BlockSpec((None, C4, tile_s1),
                               lambda p, b, s: (b, 0, p * s1_half + s))],
        out_specs=pl.BlockSpec((None, C4, 2), lambda p, b, s: (p, 0, 0)),
        compiler_params=pltpu.CompilerParams(
            dimension_semantics=("parallel", "arbitrary", "arbitrary"),
            vmem_limit_bytes=_VMEM_LIMIT,
            allow_input_fusion=[True]),
    )(merged)

    # ---- glue: fold training-mode BatchNorm (batch stats, biased variance)
    #      into the 1x1-conv weight/bias.  O(4C*out_dim) — negligible.
    stats = jnp.sum(partial_stats, axis=0)            # (4C, 2)
    count = float(B * S)                               # padded zeros excluded
    mean = stats[:, 0] / count
    var = jnp.maximum(stats[:, 1] / count - mean * mean, 0.0)
    inv_std = jax.lax.rsqrt(var + _BN_EPS)
    a = gamma.astype(jnp.float32) * inv_std            # (4C,)
    b = beta.astype(jnp.float32) - mean * a            # (4C,)

    w2d = w_pointwise.reshape(out_dim, C4).astype(jnp.float32)
    w_folded = (w2d * a[None, :]).astype(x.dtype)      # (out_dim, 4C) MXU LHS
    bias = (w2d @ b).reshape(out_dim, 1).astype(jnp.float32)

    # ---- phase 2: out[b] = W' @ merged[b] + bias, written directly NCHW ----
    out_full = pl.pallas_call(
        _proj_kernel,
        out_shape=jax.ShapeDtypeStruct((B, out_dim, s_pad), x.dtype),
        grid=(B, n_s2),
        in_specs=[
            pl.BlockSpec((None, C4, tile_s2), lambda bi, s: (bi, 0, s)),
            pl.BlockSpec((out_dim, C4), lambda bi, s: (0, 0)),   # resident weight
            pl.BlockSpec((out_dim, 1), lambda bi, s: (0, 0)),    # resident bias
        ],
        out_specs=pl.BlockSpec((None, out_dim, tile_s2), lambda bi, s: (bi, 0, s)),
        compiler_params=pltpu.CompilerParams(
            dimension_semantics=("parallel", "parallel"),
            vmem_limit_bytes=vmem_limit2,
            allow_input_fusion=[True, False, False]),
    )(merged, w_folded, bias)

    # ---- glue: crop spatial padding (no-op when s_pad == S) and un-flatten.
    return out_full[:, :, :S].reshape(B, out_dim, H2, W2)


def _reference(x, gamma, beta, w_pointwise):
    """Pure-JAX replica of the PyTorch forward (training-mode BN)."""
    C4 = 4 * x.shape[1]
    out_dim = w_pointwise.shape[0]
    x0 = x[:, :, 0::2, 0::2]
    x1 = x[:, :, 1::2, 0::2]
    x2 = x[:, :, 0::2, 1::2]
    x3 = x[:, :, 1::2, 1::2]
    xm = jnp.concatenate([x0, x1, x2, x3], axis=1)
    mean = xm.mean(axis=(0, 2, 3), keepdims=True)
    var = ((xm - mean) ** 2).mean(axis=(0, 2, 3), keepdims=True)
    xn = (xm - mean) / jnp.sqrt(var + _BN_EPS)
    xn = xn * gamma.reshape(1, C4, 1, 1) + beta.reshape(1, C4, 1, 1)
    return jnp.einsum('bchw,oc->bohw', xn, w_pointwise.reshape(out_dim, C4))


if __name__ == "__main__":
    key = jax.random.PRNGKey(0)
    kx, kg, kb, kw = jax.random.split(key, 4)

    # small shapes: dim=4, out_dim=32, spatial 16x16, batch 2
    B, C, H, W = 2, 4, 16, 16
    out_dim = 32
    C4 = 4 * C

    x = jax.random.normal(kx, (B, C, H, W), jnp.float32)
    gamma = 1.0 + 0.1 * jax.random.normal(kg, (C4,), jnp.float32)
    beta = 0.1 * jax.random.normal(kb, (C4,), jnp.float32)
    # nn.Conv2d(4*dim, out_dim, kernel_size=1, bias=False).weight shape
    w = 0.05 * jax.random.normal(kw, (out_dim, C4, 1, 1), jnp.float32)

    fn = jax.jit(patch_merging)
    out = jax.block_until_ready(fn(x, gamma, beta, w))
    assert out.shape == (B, out_dim, H // 2, W // 2), out.shape

    ref = _reference(x, gamma, beta, w)
    assert jnp.allclose(out, ref, atol=1e-4, rtol=1e-4), (
        float(jnp.max(jnp.abs(out - ref))))

    print("KERNEL_OK")
</pallas_src>

<mosaic_0001>
module attributes {stable_mosaic.version = 11 : i64} {
  func.func @_stats_kernel(%arg0: i32, %arg1: i32, %arg2: i32, %arg3: memref<1x16x128xf32, #tpu.memory_space<vmem>>, %arg4: memref<1x16x2xf32, #tpu.memory_space<vmem>>) attributes {dimension_semantics = [#tpu.dimension_semantics<parallel>, #tpu.dimension_semantics<arbitrary>, #tpu.dimension_semantics<arbitrary>], iteration_bounds = array<i64: 2, 2, 1>, scalar_prefetch = 0 : i64, scratch_operands = 0 : i64, tpu.core_type = #tpu.core_type<tc>, window_params = [{transform_indices = @transform_0, window_bounds = array<i64: 1, 16, 128>}, {transform_indices = @transform_1, window_bounds = array<i64: 1, 16, 2>}]} {
    %c0_i32 = arith.constant 0 : i32
    %0 = arith.cmpi eq, %arg1, %c0_i32 : i32
    %c0_i32_0 = arith.constant 0 : i32
    %1 = arith.cmpi eq, %arg2, %c0_i32_0 : i32
    %2 = arith.andi %0, %1 : i1
    %3 = arith.extui %2 : i1 to i32
    %c0_i32_1 = arith.constant 0 : i32
    %4 = arith.cmpi ne, %3, %c0_i32_1 : i32
    scf.if %4 {
      %cst_16 = arith.constant 0.000000e+00 : f32
      %24 = vector.broadcast %cst_16 : f32 to vector<16x2xf32>
      %c0_17 = arith.constant 0 : index
      %c0_18 = arith.constant 0 : index
      %c0_19 = arith.constant 0 : index
      %25 = vector.load %arg4[%c0_17, %c0_18, %c0_19] : memref<1x16x2xf32, #tpu.memory_space<vmem>>, vector<1x16x2xf32>
      %26 = vector.shape_cast %25 : vector<1x16x2xf32> to vector<16x2xf32>
      %27 = vector.shape_cast %24 : vector<16x2xf32> to vector<1x16x2xf32>
      tpu.vector_store %arg4[%c0_17, %c0_18, %c0_19], %27 {strides = array<i32>} : memref<1x16x2xf32, #tpu.memory_space<vmem>>, vector<1x16x2xf32>,
    } else {
    }
    %c0 = arith.constant 0 : index
    %c0_2 = arith.constant 0 : index
    %c0_3 = arith.constant 0 : index
    %5 = vector.load %arg3[%c0, %c0_2, %c0_3] : memref<1x16x128xf32, #tpu.memory_space<vmem>>, vector<1x16x128xf32>
    %6 = vector.shape_cast %5 : vector<1x16x128xf32> to vector<16x128xf32>
    %c0_4 = arith.constant 0 : index
    %c0_5 = arith.constant 0 : index
    %c0_6 = arith.constant 0 : index
    %7 = vector.load %arg4[%c0_4, %c0_5, %c0_6] : memref<1x16x2xf32, #tpu.memory_space<vmem>>, vector<1x16x1xf32>
    %8 = vector.shape_cast %7 : vector<1x16x1xf32> to vector<16x1xf32>
    %cst = arith.constant dense<0.000000e+00> : vector<16xf32>
    %9 = vector.multi_reduction <add>, %6, %cst [1] : vector<16x128xf32> to vector<16xf32>
    %10 = vector.shape_cast %9 : vector<16xf32> to vector<16x1xf32>
    %11 = arith.addf %8, %10 : vector<16x1xf32>
    %c0_7 = arith.constant 0 : index
    %c0_8 = arith.constant 0 : index
    %c0_9 = arith.constant 0 : index
    %12 = vector.load %arg4[%c0_7, %c0_8, %c0_9] : memref<1x16x2xf32, #tpu.memory_space<vmem>>, vector<1x16x1xf32>
    %13 = vector.shape_cast %12 : vector<1x16x1xf32> to vector<16x1xf32>
    %14 = vector.shape_cast %11 : vector<16x1xf32> to vector<1x16x1xf32>
    tpu.vector_store %arg4[%c0_7, %c0_8, %c0_9], %14 {strides = array<i32>} : memref<1x16x2xf32, #tpu.memory_space<vmem>>, vector<1x16x1xf32>,
    %c0_10 = arith.constant 0 : index
    %c0_11 = arith.constant 0 : index
    %c1 = arith.constant 1 : index
    %15 = vector.load %arg4[%c0_10, %c0_11, %c1] : memref<1x16x2xf32, #tpu.memory_space<vmem>>, vector<1x16x1xf32>
    %16 = vector.shape_cast %15 : vector<1x16x1xf32> to vector<16x1xf32>
    %17 = arith.mulf %6, %6 : vector<16x128xf32>
    %cst_12 = arith.constant dense<0.000000e+00> : vector<16xf32>
    %18 = vector.multi_reduction <add>, %17, %cst_12 [1] : vector<16x128xf32> to vector<16xf32>
    %19 = vector.shape_cast %18 : vector<16xf32> to vector<16x1xf32>
    %20 = arith.addf %16, %19 : vector<16x1xf32>
    %c0_13 = arith.constant 0 : index
    %c0_14 = arith.constant 0 : index
    %c1_15 = arith.constant 1 : index
    %21 = vector.load %arg4[%c0_13, %c0_14, %c1_15] : memref<1x16x2xf32, #tpu.memory_space<vmem>>, vector<1x16x1xf32>
    %22 = vector.shape_cast %21 : vector<1x16x1xf32> to vector<16x1xf32>
    %23 = vector.shape_cast %20 : vector<16x1xf32> to vector<1x16x1xf32>
    tpu.vector_store %arg4[%c0_13, %c0_14, %c1_15], %23 {strides = array<i32>} : memref<1x16x2xf32, #tpu.memory_space<vmem>>, vector<1x16x1xf32>,
    return
  }
  func.func @transform_0(%arg0: i32, %arg1: i32, %arg2: i32) -> (i32, i32, i32) {
    %c1_i32 = arith.constant 1 : i32
    %0 = arith.muli %arg0, %c1_i32 : i32
    %1 = arith.addi %0, %arg2 : i32
    %c0_i32 = arith.constant 0 : i32
    %c0_i32_0 = arith.constant 0 : i32
    return %arg1, %c0_i32, %1 : i32, i32, i32
  }
  func.func @transform_1(%arg0: i32, %arg1: i32, %arg2: i32) -> (i32, i32, i32) {
    %c0_i32 = arith.constant 0 : i32
    %c0_i32_0 = arith.constant 0 : i32
    %c0_i32_1 = arith.constant 0 : i32
    return %arg0, %c0_i32, %c0_i32_0 : i32, i32, i32
  }
}

module attributes {stable_mosaic.version = 11 : i64} {
  func.func @_proj_kernel(%arg0: i32, %arg1: i32, %arg2: memref<1x16x128xf32, #tpu.memory_space<vmem>>, %arg3: memref<32x16xf32, #tpu.memory_space<vmem>>, %arg4: memref<32x1xf32, #tpu.memory_space<vmem>>, %arg5: memref<1x32x128xf32, #tpu.memory_space<vmem>>) attributes {dimension_semantics = [#tpu.dimension_semantics<parallel>, #tpu.dimension_semantics<parallel>], iteration_bounds = array<i64: 2, 2>, scalar_prefetch = 0 : i64, scratch_operands = 0 : i64, tpu.core_type = #tpu.core_type<tc>, window_params = [{transform_indices = @transform_0, window_bounds = array<i64: 1, 16, 128>}, {pipeline_mode = #tpu.pipeline_mode<synchronous>, transform_indices = @transform_1, window_bounds = array<i64: 32, 16>}, {pipeline_mode = #tpu.pipeline_mode<synchronous>, transform_indices = @transform_2, window_bounds = array<i64: 32, 1>}, {transform_indices = @transform_3, window_bounds = array<i64: 1, 32, 128>}]} {
    %c0 = arith.constant 0 : index
    %c0_0 = arith.constant 0 : index
    %0 = vector.load %arg3[%c0, %c0_0] : memref<32x16xf32, #tpu.memory_space<vmem>>, vector<32x16xf32>
    %c0_1 = arith.constant 0 : index
    %c0_2 = arith.constant 0 : index
    %c0_3 = arith.constant 0 : index
    %1 = vector.load %arg2[%c0_1, %c0_2, %c0_3] : memref<1x16x128xf32, #tpu.memory_space<vmem>>, vector<1x16x128xf32>
    %2 = vector.shape_cast %1 : vector<1x16x128xf32> to vector<16x128xf32>
    %cst = arith.constant dense<0.000000e+00> : vector<32x128xf32>
    %3 = tpu.matmul %0, %2, %cst {dimension_numbers = #tpu.dot_dimension_numbers<[1], [0], [0], [1], [0, 0, 1, 1], [], []>} : vector<32x16xf32>, vector<16x128xf32>, vector<32x128xf32> -> vector<32x128xf32>
    %c0_4 = arith.constant 0 : index
    %c0_5 = arith.constant 0 : index
    %4 = vector.load %arg4[%c0_4, %c0_5] : memref<32x1xf32, #tpu.memory_space<vmem>>, vector<32x1xf32>
    %5 = vector.broadcast %4 : vector<32x1xf32> to vector<32x128xf32>
    %6 = arith.addf %3, %5 : vector<32x128xf32>
    %c0_6 = arith.constant 0 : index
    %c0_7 = arith.constant 0 : index
    %c0_8 = arith.constant 0 : index
    %7 = vector.load %arg5[%c0_6, %c0_7, %c0_8] : memref<1x32x128xf32, #tpu.memory_space<vmem>>, vector<1x32x128xf32>
    %8 = vector.shape_cast %7 : vector<1x32x128xf32> to vector<32x128xf32>
    %9 = vector.shape_cast %6 : vector<32x128xf32> to vector<1x32x128xf32>
    tpu.vector_store %arg5[%c0_6, %c0_7, %c0_8], %9 {strides = array<i32>} : memref<1x32x128xf32, #tpu.memory_space<vmem>>, vector<1x32x128xf32>,
    return
  }
  func.func @transform_0(%arg0: i32, %arg1: i32) -> (i32, i32, i32) {
    %c0_i32 = arith.constant 0 : i32
    %c0_i32_0 = arith.constant 0 : i32
    return %arg0, %c0_i32, %arg1 : i32, i32, i32
  }
  func.func @transform_1(%arg0: i32, %arg1: i32) -> (i32, i32) {
    %c0_i32 = arith.constant 0 : i32
    %c0_i32_0 = arith.constant 0 : i32
    %c0_i32_1 = arith.constant 0 : i32
    return %c0_i32, %c0_i32_0 : i32, i32
  }
  func.func @transform_2(%arg0: i32, %arg1: i32) -> (i32, i32) {
    %c0_i32 = arith.constant 0 : i32
    %c0_i32_0 = arith.constant 0 : i32
    %c0_i32_1 = arith.constant 0 : i32
    return %c0_i32, %c0_i32_0 : i32, i32
  }
  func.func @transform_3(%arg0: i32, %arg1: i32) -> (i32, i32, i32) {
    %c0_i32 = arith.constant 0 : i32
    %c0_i32_0 = arith.constant 0 : i32
    return %arg0, %c0_i32, %arg1 : i32, i32, i32
  }
}

</mosaic_0001>

<llo_original>
// kernel: patch_merging.5
$region0: #{patch_merging.5}
  #allocation0 [shape = 'u32[]', space=smem, size = 0x4, offset = 0x4, fixed_abs, tag = 'smem constant byte address 0x4 - core index']
  #allocation1 [shape = 'u32[144,128]{1,0:T(1,128)}', space=vmem, size = 0x12000, scoped, tag = 'internal scratch']
  #allocation2 [shape = 'u32[2048]{0}', space=vmem, size = 0x2000, scoped, tag = 'scoped memory for patch_merging.5']
  #allocation3 [shape = 'u32[2048]{0}', space=vmem, size = 0x2000, scoped, tag = 'scoped memory for patch_merging.5']
  #allocation4 [shape = 'u32[2048]{0}', space=vmem, size = 0x2000, scoped, tag = 'scoped memory for patch_merging.5']
  #allocation5 [shape = 'u32[2048]{0}', space=vmem, size = 0x2000, scoped, tag = 'scoped memory for patch_merging.5']
  #allocation6 [shape = 'u32[2048]{0}', space=vmem, size = 0x2000, scoped, tag = 'scoped memory for patch_merging.5']
  %s0 = inlined_call_operand.vmem [shape: f32[2,16,64], index: 0, kind: input, shape index: {}]
  %s1 = inlined_call_operand.<no memory space> [shape: f32[], index: 1, kind: input, shape index: {}]
  %s2 = inlined_call_operand.vmem [shape: f32[2,16,2], index: 2, kind: output, shape index: {}]
  %s3 = sld [smem:[#allocation0]]
  $region41: #{patch_merging.5} parent=0
    _
  %s5 = ssub.s32 1, %s3
  %s6 = scalar_select 0, %s5, %s3
  %v7 = vstv %s1
  loop: start=0, step=1, limit=6
  $region2: #{patch_merging.5} parent=0 // loop_pre_header
    _
  $region3: #{patch_merging.5} parent=0 // loop_header
    %s9 = sphi 0, %s13
    %p10 = scmp.ge.s32.totalorder %s9, 6
    %s16 = sphi 0, %s35
    %s17 = sphi 0, %s31
    %s18 = sphi 0, %s27
    %s19 = sphi 0, %s16
    %s20 = sphi 0, %s17
    %s21 = sphi 0, %s18
    %s22 = sphi 0, %s19
    %s23 = sphi 0, %s20
    %s24 = sphi 0, %s21
    %s42 = sphi 0, %s44
    %s45 = sphi 0, %s42
    %s46 = sphi 0, %s45
    %s62 = sphi 0, %s46
    %s68 = sphi 0, %s70
    %s71 = sphi 0, %s68
    %s72 = sphi 0, %s71
    %s88 = sphi 0, %s72
  $region4: #{patch_merging.5} parent=0 // loop_header_branch
    %12 = sbr.rel (%p10) target = $region8
  $region5: #{patch_merging.5} parent=0 // loop_body
    %s14 = ssub.s32 %s9, 1
    %s15 = ssub.s32 %s9, 2
    %s25 = sadd.s32 1, %s18
    %p26 = scmp.ge.s32.totalorder %s25, 1
    %s27 = scalar_select %p26, 0, %s25
    %s28 = sadd.s32 1, %s17
    %s29 = scalar_select %p26, %s28, %s17
    %p30 = scmp.ge.s32.totalorder %s29, 2
    %s31 = scalar_select %p30, 0, %s29
    %s32 = sadd.s32 1, %s16
    %s33 = scalar_select %p30, %s32, %s16
    %p34 = scmp.ge.s32.totalorder %s33, 2
    %s35 = scalar_select %p34, 0, %s33
    %s36 = sadd.s32 %s16, %s18
    %s37 = sadd.s32 %s35, %s27
    %s38 = ssub.s32 %s17, %s31
    %s39 = ssub.s32 %s36, %s37
    %s40 = sor.u32 %s38, %s39
    %p41 = scmp.eq.s32.totalorder %s40, 0
    %s43 = sadd.s32 %s42, 1
    %s44 = scalar_select %p41, %s42, %s43
    %p47 = pneg %p41
    %p48 = scmp.eq.s32.totalorder %s9, 3
    %p49 = por %p47, %p48
    %p50 = scmp.ne.s32.totalorder %s42, %s45
    %p51 = scmp.eq.s32.totalorder %s9, 0
    %p52 = por %p50, %p51
    %p53 = scmp.ne.s32.totalorder %s42, %s45
    %p54 = scmp.eq.s32.totalorder %s14, 3
    %p55 = por %p53, %p54
    %p56 = scmp.ne.s32.totalorder %s45, %s46
    %p57 = scmp.eq.s32.totalorder %s14, 0
    %p58 = por %p56, %p57
    %p59 = scmp.ne.s32.totalorder %s45, %s46
    %p60 = scmp.eq.s32.totalorder %s15, 3
    %p61 = por %p59, %p60
    %p63 = scmp.ne.s32.totalorder %s46, %s62
    %p64 = scmp.eq.s32.totalorder %s15, 0
    %p65 = por %p63, %p64
    %s66 = ssub.s32 %s16, %s35
    %p67 = scmp.eq.s32.totalorder %s66, 0
    %s69 = sadd.s32 %s68, 1
    %s70 = scalar_select %p67, %s68, %s69
    %p73 = pneg %p67
    %p74 = scmp.eq.s32.totalorder %s9, 3
    %p75 = por %p73, %p74
    %p76 = scmp.ne.s32.totalorder %s68, %s71
    %p77 = scmp.eq.s32.totalorder %s9, 0
    %p78 = por %p76, %p77
    %p79 = scmp.ne.s32.totalorder %s68, %s71
    %p80 = scmp.eq.s32.totalorder %s14, 3
    %p81 = por %p79, %p80
    %p82 = scmp.ne.s32.totalorder %s71, %s72
    %p83 = scmp.eq.s32.totalorder %s14, 0
    %p84 = por %p82, %p83
    %p85 = scmp.ne.s32.totalorder %s71, %s72
    %p86 = scmp.eq.s32.totalorder %s15, 3
    %p87 = por %p85, %p86
    %p89 = scmp.ne.s32.totalorder %s72, %s88
    %p90 = scmp.eq.s32.totalorder %s15, 0
    %p91 = por %p89, %p90
    %p92 = scmp.le.s32.totalorder 1, %s9
    %p93 = scmp.lt.s32.totalorder %s9, 5
    %p94 = pnand %p92, %p93
    %p95 = pneg %p94
    // Predicated region
    $region9: #{patch_merging.5} parent=5 // pred_check
      _
    $region10: #{patch_merging.5} parent=5 // pred_check_branch
      %97 = sbr.rel (%p94) target = $region12
    $region11: #{patch_merging.5} parent=5 // pred_region
      %s98 = ssub.s32 %s9, 1
    $region12: #{patch_merging.5} parent=5 // pred_fallthru
      _
    %p99 = scmp.lt.s32.totalorder %s9, 4
    // Predicated region
    $region13: #{patch_merging.5} parent=5 // pred_check
      %p100 = pneg %p99
    $region14: #{patch_merging.5} parent=5 // pred_check_branch
      %102 = sbr.rel (%p100) target = $region16
    $region15: #{patch_merging.5} parent=5 // pred_region
      // Predicated region
      $region17: #{patch_merging.5} parent=15 // pred_check
        %p103 = pneg %p52
      $region18: #{patch_merging.5} parent=15 // pred_check_branch
        %105 = sbr.rel (%p103) target = $region20
      $region19: #{patch_merging.5} parent=15 // pred_region
        %s106 = sadd.s32 %s16, %s18
        %s107 = ssub.s32 1, %s106
        %p108 = scmp.gt.s32.totalorder %s107, 0
        %s109 = scalar_select %p108, %s107, 0
        %s110 = smul.u32 256, %s109
        %p111 = scmp.lt.s32.totalorder %s17, 1
        %s112 = scalar_select %p111, %s17, 1
        %p113 = scmp.lt.s32.totalorder %s106, 0
        %s114 = scalar_select %p113, %s106, 0
        %s115 = smul.addr %s112, 2
        %s116 = sadd.s32 %s114, %s115
        %s117 = smul.addr %s116, 8
        %s118 = scalar_lea.vmem %s0, %s117
        %s119 = sadd.s32 %s16, %s18
        %s120 = ssub.s32 1, %s119
        %p121 = scmp.gt.s32.totalorder %s120, 0
        %s122 = scalar_select %p121, %s120, 0
        %s123 = smul.u32 256, %s122
      $region20: #{patch_merging.5} parent=15 // pred_fallthru
        _
    $region16: #{patch_merging.5} parent=5 // pred_fallthru
      _
    %p124 = scmp.le.s32.totalorder 1, %s9
    %p125 = scmp.lt.s32.totalorder %s9, 5
    %p126 = pnand %p124, %p125
    %p127 = pneg %p126
    // Predicated region
    $region21: #{patch_merging.5} parent=5 // pred_check
      _
    $region22: #{patch_merging.5} parent=5 // pred_check_branch
      %129 = sbr.rel (%p126) target = $region24
    $region23: #{patch_merging.5} parent=5 // pred_region
      #allocation7 [shape = 'u8[8192]{0}', space=vmem, size = 0x2000, dematerialized = true, scoped, tag = 'FusionAdapter Buffer %fusion.3 = f32[2,16,256]{2,1,0:T(8,128)} fusion(%param_0.4, %param_1.3), kind=kLoop, calls=%fused_computation.3.clone, metadata={op_name="jit(patch_merging)/jit(_pad)/pad" stack_frame_id=10}']
      %s130 = ssub.s32 %s9, 1
      %s131 = sadd.s32 %s19, %s21
      %s132 = ssub.s32 1, %s131
      %p133 = scmp.gt.s32.totalorder %s132, 0
      %s134 = scalar_select %p133, %s132, 0
      %s135 = smul.u32 256, %s134
      %p136 = scmp.lt.s32.totalorder %s20, 1
      %s137 = scalar_select %p136, %s20, 1
      %p138 = scmp.lt.s32.totalorder %s131, 0
      %s139 = scalar_select %p138, %s131, 0
      %s140 = smul.addr %s137, 2
      %s141 = sadd.s32 %s139, %s140
      %s142 = smul.addr %s141, 8
      %s143 = scalar_lea.vmem %s0, %s142
      %p144 = pneg %p58
      %p145 = pneg %p55
      %p146 = pneg %p84
      %p147 = pneg %p81
      %p148 = scmp.lt.s32.totalorder %s19, 1
      %s149 = scalar_select %p148, %s19, 1
      %s150 = smul.addr %s149, 2
      %s151 = smul.addr %s150, 8
      %s152 = scalar_lea.vmem %s2, %s151
      %s153 = sadd.s32 %s19, %s21
      %s154 = ssub.s32 1, %s153
      %p155 = scmp.gt.s32.totalorder %s154, 0
      %s156 = scalar_select %p155, %s154, 0
      %s157 = smul.u32 256, %s156
      %p158 = scmp.lt.s32.totalorder %s20, 1
      %s159 = scalar_select %p158, %s20, 1
      %p160 = scmp.lt.s32.totalorder %s153, 0
      %s161 = scalar_select %p160, %s153, 0
      %s162 = smul.addr %s159, 2
      %s163 = sadd.s32 %s161, %s162
      %s164 = smul.addr %s163, 8
      %s165 = scalar_lea.vmem %s0, %s164
      %s166 = sadd.s32 %s19, %s21
      %s167 = ssub.s32 1, %s166
      %p168 = scmp.gt.s32.totalorder %s167, 0
      %s169 = scalar_select %p168, %s167, 0
      %s170 = smul.u32 256, %s169
      %p171 = scmp.lt.s32.totalorder %s19, 1
      %s172 = scalar_select %p171, %s19, 1
      %s173 = smul.addr %s172, 2
      %s174 = smul.addr %s173, 8
      %s175 = scalar_lea.vmem %s2, %s174
      %s176 = ssub.s32 0, %s166
      %p177 = scmp.lt.s32.totalorder %s176, 0
      %s178 = scalar_select %p177, 0, 255
      %v179 = vld [vmem:[%s165] sm:%s178]
      %s180 = ssub.s32 0, %s166
      %v181 = vstv %s180
      %vm182 = vcmp.lt.s32.totalorder %v181, 0
      %v183 = vsel %vm182, %v7, %v179
      %s184 = smul.addr %s166, 128
      %v185 = vlaneseq
      %v186 = vand.u32 %v185, 127
      %v187 = vstv %s184
      %v188 = vadd.s32 %v186, %v187
      %vm189 = vcmp.lt.s32.totalorder %v188, 64
      %v190 = vsel %vm189, %v183, %v7
      %s192 = ssub.s32 256, 1
      %193 = vst [vmem:[#allocation7] sm:%s192] %v190
      %s194 = scalar_lea.vmem %s165, 8
      %s195 = ssub.s32 0, %s166
      %p196 = scmp.lt.s32.totalorder %s195, 0
      %s197 = scalar_select %p196, 0, 255
      %v198 = vld [vmem:[%s194] sm:%s197]
      %s199 = ssub.s32 0, %s166
      %v200 = vstv %s199
      %vm201 = vcmp.lt.s32.totalorder %v200, 0
      %v202 = vsel %vm201, %v7, %v198
      %s203 = smul.addr %s166, 128
      %v204 = vlaneseq
      %v205 = vand.u32 %v204, 127
      %v206 = vstv %s203
      %v207 = vadd.s32 %v205, %v206
      %vm208 = vcmp.lt.s32.totalorder %v207, 64
      %v209 = vsel %vm208, %v202, %v7
      %s210 = scalar_lea.vmem [#allocation7], 8
      %s212 = ssub.s32 256, 1
      %213 = vst [vmem:[%s210] sm:%s212] %v209
      %p214 = scmp.eq.s32.totalorder %s20, 0
      %p215 = scmp.eq.s32.totalorder %s21, 0
      %p216 = pnand %p214, %p215
      %p217 = pneg %p216
      // Predicated region
      $region25: #{patch_merging.5} parent=23 // pred_check
        _
      $region26: #{patch_merging.5} parent=23 // pred_check_branch
        %219 = sbr.rel (%p216) target = $region28
      $region27: #{patch_merging.5} parent=23 // pred_region
        %vm220 = vcmask 15360
        %221 = vst.msk [vmem:[%s175] sm:$0xff] %vm220, 0.0
        %222 = vst.msk [vmem:[%s175 + $0x8] sm:$0xff] %vm220, 0.0
      $region28: #{patch_merging.5} parent=23 // pred_fallthru
        _
      %v223 = vld [vmem:[#allocation7] sm:$0xff]
      %v224 = vld [vmem:[#allocation7 + $0x8] sm:$0xff]
      %v225 = vld [vmem:[%s175] sm:$0xff]
      %v226 = vld [vmem:[%s175 + $0x8] sm:$0xff]
      %227 = vadd.xlane.f32.xlu0 %v223
      %v228 = vpop.xlane.xlu0 %227
      %229 = vadd.xlane.f32.xlu0 %v224
      %v230 = vpop.xlane.xlu0 %229
      %v231 = vadd.f32 %v225, %v228
      %v232 = vadd.f32 %v226, %v230
      %vm233 = vcmask 7168
      %234 = vst.msk [vmem:[%s175] sm:$0xff] %vm233, %v231
      %235 = vst.msk [vmem:[%s175 + $0x8] sm:$0xff] %vm233, %v232
      %v236 = vld [vmem:[%s175] sm:$0xff]
      %v237 = vld [vmem:[%s175 + $0x8] sm:$0xff]
      %v238 = vmul.f32 %v223, %v223
      %v239 = vmul.f32 %v224, %v224
      %240 = vadd.xlane.f32.xlu0 %v238
      %v241 = vpop.xlane.xlu0 %240
      %242 = vadd.xlane.f32.xlu0 %v239
      %v243 = vpop.xlane.xlu0 %242
      %v244 = vadd.f32 %v236, %v241
      %v245 = vadd.f32 %v237, %v243
      %vm246 = vcmask 15368
      %247 = vst.msk [vmem:[%s175] sm:$0xff] %vm246, %v244
      %248 = vst.msk [vmem:[%s175 + $0x8] sm:$0xff] %vm246, %v245
      %p249 = scmp.lt.s32.totalorder %s19, 1
      %s250 = scalar_select %p249, %s19, 1
      %s251 = smul.addr %s250, 2
      %s252 = smul.addr %s251, 8
      %s253 = scalar_lea.vmem %s2, %s252
      // Predicated region
      $region29: #{patch_merging.5} parent=23 // pred_check
        %p254 = pneg %p81
      $region30: #{patch_merging.5} parent=23 // pred_check_branch
        %256 = sbr.rel (%p254) target = $region32
      $region31: #{patch_merging.5} parent=23 // pred_region
        _
      $region32: #{patch_merging.5} parent=23 // pred_fallthru
        _
    $region24: #{patch_merging.5} parent=5 // pred_fallthru
      _
    %p257 = scmp.le.s32.totalorder 2, %s9
    // Predicated region
    $region33: #{patch_merging.5} parent=5 // pred_check
      %p258 = pneg %p257
    $region34: #{patch_merging.5} parent=5 // pred_check_branch
      %260 = sbr.rel (%p258) target = $region36
    $region35: #{patch_merging.5} parent=5 // pred_region
      %s261 = ssub.s32 %s9, 2
      // Predicated region
      $region37: #{patch_merging.5} parent=35 // pred_check
        %p262 = pneg %p87
      $region38: #{patch_merging.5} parent=35 // pred_check_branch
        %264 = sbr.rel (%p262) target = $region40
      $region39: #{patch_merging.5} parent=35 // pred_region
        %p265 = scmp.lt.s32.totalorder %s22, 1
        %s266 = scalar_select %p265, %s22, 1
        %s267 = smul.addr %s266, 2
        %s268 = smul.addr %s267, 8
        %s269 = scalar_lea.vmem %s2, %s268
      $region40: #{patch_merging.5} parent=35 // pred_fallthru
        _
    $region36: #{patch_merging.5} parent=5 // pred_fallthru
      _
  $region6: #{patch_merging.5} parent=0 // loop_footer
    %s13 = sadd.s32 1, %s9
  $region7: #{patch_merging.5} parent=0 // loop_footer_branch
    %8 = sbr.rel target = $region3
  $region8: #{patch_merging.5} parent=0 // loop_exit
    _

// kernel: patch_merging.4
$region0: #{patch_merging.4}
  #allocation0 [shape = 'u32[]', space=smem, size = 0x4, offset = 0x4, fixed_abs, tag = 'smem constant byte address 0x4 - core index']
  #allocation1 [shape = 'u32[144,128]{1,0:T(1,128)}', space=vmem, size = 0x12000, scoped, tag = 'internal scratch']
  #allocation2 [shape = 'u32[2048]{0}', space=vmem, size = 0x2000, scoped, tag = 'scoped memory for patch_merging.4']
  #allocation3 [shape = 'u32[2048]{0}', space=vmem, size = 0x2000, scoped, tag = 'scoped memory for patch_merging.4']
  #allocation4 [shape = 'u32[2048]{0}', space=vmem, size = 0x2000, scoped, tag = 'scoped memory for patch_merging.4']
  #allocation5 [shape = 'u32[2048]{0}', space=vmem, size = 0x2000, scoped, tag = 'scoped memory for patch_merging.4']
  #allocation6 [shape = 'u32[2048]{0}', space=vmem, size = 0x2000, scoped, tag = 'scoped memory for patch_merging.4']
  %s0 = inlined_call_operand.vmem [shape: f32[32,16], index: 0, kind: input, shape index: {}]
  %s1 = inlined_call_operand.vmem [shape: f32[32,1], index: 1, kind: input, shape index: {}]
  %s2 = inlined_call_operand.vmem [shape: f32[2,16,64], index: 2, kind: input, shape index: {}]
  %s3 = inlined_call_operand.<no memory space> [shape: f32[], index: 3, kind: input, shape index: {}]
  %s4 = inlined_call_operand.vmem [shape: f32[2,32,256], index: 4, kind: output, shape index: {}]
  %s5 = sld [smem:[#allocation0]]
  $region79: #{patch_merging.4} parent=0
    _
  %s7 = ssub.s32 1, %s5
  %s8 = scalar_select 0, %s7, %s5
  %v9 = vstv %s3
  $region1: #{patch_merging.4} parent=0
    #allocation7 [shape = 'u8[32768]{0}', space=vmem, size = 0x8000, scoped, tag = 'output window, operand 0']
    loop: start=0, step=1, limit=6
    $region2: #{patch_merging.4} parent=1 // loop_pre_header
      _
    $region3: #{patch_merging.4} parent=1 // loop_header
      %s11 = sphi 0, %s15
      %p12 = scmp.ge.s32.totalorder %s11, 6
      %s18 = sphi 0, %s30
      %s19 = sphi 0, %s26
      %s20 = sphi 0, %s18
      %s21 = sphi 0, %s19
      %s22 = sphi 0, %s20
      %s23 = sphi 0, %s21
      %s35 = sphi 0, %s37
      %s38 = sphi 0, %s35
      %s39 = sphi 0, %s38
      %s55 = sphi 0, %s39
      %s59 = sphi 0, %s59
      %s61 = sphi 0, %s59
      %s62 = sphi 0, %s61
      %s76 = sphi 0, %s62
      %s80 = sphi 0, %s80
      %s82 = sphi 0, %s80
      %s83 = sphi 0, %s82
      %s97 = sphi 0, %s83
      %s105 = sphi 0, %s107
      %s108 = sphi 0, %s105
      %s109 = sphi 0, %s108
      %s125 = sphi 0, %s109
    $region4: #{patch_merging.4} parent=1 // loop_header_branch
      %14 = sbr.rel (%p12) target = $region8
    $region5: #{patch_merging.4} parent=1 // loop_body
      %s16 = ssub.s32 %s11, 1
      %s17 = ssub.s32 %s11, 2
      %s24 = sadd.s32 1, %s19
      %p25 = scmp.ge.s32.totalorder %s24, 2
      %s26 = scalar_select %p25, 0, %s24
      %s27 = sadd.s32 1, %s18
      %s28 = scalar_select %p25, %s27, %s18
      %p29 = scmp.ge.s32.totalorder %s28, 2
      %s30 = scalar_select %p29, 0, %s28
      %s31 = ssub.s32 %s18, %s30
      %s32 = ssub.s32 %s19, %s26
      %s33 = sor.u32 %s31, %s32
      %p34 = scmp.eq.s32.totalorder %s33, 0
      %s36 = sadd.s32 %s35, 1
      %s37 = scalar_select %p34, %s35, %s36
      %p40 = pneg %p34
      %p41 = scmp.eq.s32.totalorder %s11, 3
      %p42 = por %p40, %p41
      %p43 = scmp.ne.s32.totalorder %s35, %s38
      %p44 = scmp.eq.s32.totalorder %s11, 0
      %p45 = por %p43, %p44
      %p46 = scmp.ne.s32.totalorder %s35, %s38
      %p47 = scmp.eq.s32.totalorder %s16, 3
      %p48 = por %p46, %p47
      %p49 = scmp.ne.s32.totalorder %s38, %s39
      %p50 = scmp.eq.s32.totalorder %s16, 0
      %p51 = por %p49, %p50
      %p52 = scmp.ne.s32.totalorder %s38, %s39
      %p53 = scmp.eq.s32.totalorder %s17, 3
      %p54 = por %p52, %p53
      %p56 = scmp.ne.s32.totalorder %s39, %s55
      %p57 = scmp.eq.s32.totalorder %s17, 0
      %p58 = por %p56, %p57
      %s60 = sadd.s32 %s59, 1
      %p63 = scmp.eq.s32.totalorder %s11, 3
      %p64 = scmp.ne.s32.totalorder %s59, %s61
      %p65 = scmp.eq.s32.totalorder %s11, 0
      %p66 = por %p64, %p65
      %p67 = scmp.ne.s32.totalorder %s59, %s61
      %p68 = scmp.eq.s32.totalorder %s16, 3
      %p69 = por %p67, %p68
      %p70 = scmp.ne.s32.totalorder %s61, %s62
      %p71 = scmp.eq.s32.totalorder %s16, 0
      %p72 = por %p70, %p71
      %p73 = scmp.ne.s32.totalorder %s61, %s62
      %p74 = scmp.eq.s32.totalorder %s17, 3
      %p75 = por %p73, %p74
      %p77 = scmp.ne.s32.totalorder %s62, %s76
      %p78 = scmp.eq.s32.totalorder %s17, 0
      %p79 = por %p77, %p78
      %s81 = sadd.s32 %s80, 1
      %p84 = scmp.eq.s32.totalorder %s11, 3
      %p85 = scmp.ne.s32.totalorder %s80, %s82
      %p86 = scmp.eq.s32.totalorder %s11, 0
      %p87 = por %p85, %p86
      %p88 = scmp.ne.s32.totalorder %s80, %s82
      %p89 = scmp.eq.s32.totalorder %s16, 3
      %p90 = por %p88, %p89
      %p91 = scmp.ne.s32.totalorder %s82, %s83
      %p92 = scmp.eq.s32.totalorder %s16, 0
      %p93 = por %p91, %p92
      %p94 = scmp.ne.s32.totalorder %s82, %s83
      %p95 = scmp.eq.s32.totalorder %s17, 3
      %p96 = por %p94, %p95
      %p98 = scmp.ne.s32.totalorder %s83, %s97
      %p99 = scmp.eq.s32.totalorder %s17, 0
      %p100 = por %p98, %p99
      %s101 = ssub.s32 %s18, %s30
      %s102 = ssub.s32 %s19, %s26
      %s103 = sor.u32 %s101, %s102
      %p104 = scmp.eq.s32.totalorder %s103, 0
      %s106 = sadd.s32 %s105, 1
      %s107 = scalar_select %p104, %s105, %s106
      %p110 = pneg %p104
      %p111 = scmp.eq.s32.totalorder %s11, 3
      %p112 = por %p110, %p111
      %p113 = scmp.ne.s32.totalorder %s105, %s108
      %p114 = scmp.eq.s32.totalorder %s11, 0
      %p115 = por %p113, %p114
      %p116 = scmp.ne.s32.totalorder %s105, %s108
      %p117 = scmp.eq.s32.totalorder %s16, 3
      %p118 = por %p116, %p117
      %p119 = scmp.ne.s32.totalorder %s108, %s109
      %p120 = scmp.eq.s32.totalorder %s16, 0
      %p121 = por %p119, %p120
      %p122 = scmp.ne.s32.totalorder %s108, %s109
      %p123 = scmp.eq.s32.totalorder %s17, 3
      %p124 = por %p122, %p123
      %p126 = scmp.ne.s32.totalorder %s109, %s125
      %p127 = scmp.eq.s32.totalorder %s17, 0
      %p128 = por %p126, %p127
      %p129 = scmp.le.s32.totalorder 1, %s11
      %p130 = scmp.lt.s32.totalorder %s11, 5
      %p131 = pnand %p129, %p130
      %p132 = pneg %p131
      // Predicated region
      $region9: #{patch_merging.4} parent=5 // pred_check
        _
      $region10: #{patch_merging.4} parent=5 // pred_check_branch
        %134 = sbr.rel (%p131) target = $region12
      $region11: #{patch_merging.4} parent=5 // pred_region
        %s135 = ssub.s32 %s11, 1
        // Predicated region
        $region13: #{patch_merging.4} parent=11 // pred_check
          %p136 = pneg %p72
        $region14: #{patch_merging.4} parent=11 // pred_check_branch
          %138 = sbr.rel (%p136) target = $region16
        $region15: #{patch_merging.4} parent=11 // pred_region
          _
        $region16: #{patch_merging.4} parent=11 // pred_fallthru
          _
        // Predicated region
        $region17: #{patch_merging.4} parent=11 // pred_check
          %p139 = pneg %p93
        $region18: #{patch_merging.4} parent=11 // pred_check_branch
          %141 = sbr.rel (%p139) target = $region20
        $region19: #{patch_merging.4} parent=11 // pred_region
          _
        $region20: #{patch_merging.4} parent=11 // pred_fallthru
          _
      $region12: #{patch_merging.4} parent=5 // pred_fallthru
        _
      %p142 = scmp.lt.s32.totalorder %s11, 4
      // Predicated region
      $region21: #{patch_merging.4} parent=5 // pred_check
        %p143 = pneg %p142
      $region22: #{patch_merging.4} parent=5 // pred_check_branch
        %145 = sbr.rel (%p143) target = $region24
      $region23: #{patch_merging.4} parent=5 // pred_region
        // Predicated region
        $region25: #{patch_merging.4} parent=23 // pred_check
          %p146 = pneg %p45
        $region26: #{patch_merging.4} parent=23 // pred_check_branch
          %148 = sbr.rel (%p146) target = $region28
        $region27: #{patch_merging.4} parent=23 // pred_region
          %s149 = ssub.s32 1, %s19
          %p150 = scmp.gt.s32.totalorder %s149, 0
          %s151 = scalar_select %p150, %s149, 0
          %s152 = smul.u32 256, %s151
          %p153 = scmp.lt.s32.totalorder %s18, 1
          %s154 = scalar_select %p153, %s18, 1
          %p155 = scmp.lt.s32.totalorder %s19, 0
          %s156 = scalar_select %p155, %s19, 0
          %s157 = smul.addr %s154, 2
          %s158 = sadd.s32 %s156, %s157
          %s159 = smul.addr %s158, 8
          %s160 = scalar_lea.vmem %s2, %s159
          %s161 = ssub.s32 1, %s19
          %p162 = scmp.gt.s32.totalorder %s161, 0
          %s163 = scalar_select %p162, %s161, 0
          %s164 = smul.u32 256, %s163
        $region28: #{patch_merging.4} parent=23 // pred_fallthru
          _
      $region24: #{patch_merging.4} parent=5 // pred_fallthru
        _
      %p165 = scmp.le.s32.totalorder 1, %s11
      %p166 = scmp.lt.s32.totalorder %s11, 5
      %p167 = pnand %p165, %p166
      %p168 = pneg %p167
      // Predicated region
      $region29: #{patch_merging.4} parent=5 // pred_check
        _
      $region30: #{patch_merging.4} parent=5 // pred_check_branch
        %170 = sbr.rel (%p167) target = $region32
      $region31: #{patch_merging.4} parent=5 // pred_region
        #allocation8 [shape = 'u8[8192]{0}', space=vmem, size = 0x2000, dematerialized = true, scoped, tag = 'FusionAdapter Buffer %fusion.1 = f32[2,16,256]{2,1,0:T(8,128)} fusion(%param_2.1, %param_3), kind=kLoop, calls=%fused_computation.1.clone, metadata={op_name="jit(patch_merging)/jit(_pad)/pad" stack_frame_id=10}']
        %s171 = ssub.s32 %s11, 1
        %s172 = ssub.s32 1, %s21
        %p173 = scmp.gt.s32.totalorder %s172, 0
        %s174 = scalar_select %p173, %s172, 0
        %s175 = smul.u32 256, %s174
        %p176 = scmp.lt.s32.totalorder %s20, 1
        %s177 = scalar_select %p176, %s20, 1
        %p178 = scmp.lt.s32.totalorder %s21, 0
        %s179 = scalar_select %p178, %s21, 0
        %s180 = smul.addr %s177, 2
        %s181 = sadd.s32 %s179, %s180
        %s182 = smul.addr %s181, 8
        %s183 = scalar_lea.vmem %s2, %s182
        %p184 = pneg %p51
        %p185 = pneg %p48
        %p186 = pneg %p72
        %p187 = pneg %p69
        %p188 = pneg %p93
        %p189 = pneg %p90
        %p190 = pneg %p121
        %p191 = pneg %p118
        %s192 = sand.u32 %s108, 1
        %s193 = sand.u32 %s108, 1
        %s194 = smul.addr %s193, 32
        %s195 = scalar_lea.vmem [#allocation7], %s194
        %s196 = ssub.s32 1, %s21
        %p197 = scmp.gt.s32.totalorder %s196, 0
        %s198 = scalar_select %p197, %s196, 0
        %s199 = smul.u32 256, %s198
        %p200 = scmp.lt.s32.totalorder %s20, 1
        %s201 = scalar_select %p200, %s20, 1
        %p202 = scmp.lt.s32.totalorder %s21, 0
        %s203 = scalar_select %p202, %s21, 0
        %s204 = smul.addr %s201, 2
        %s205 = sadd.s32 %s203, %s204
        %s206 = smul.addr %s205, 8
        %s207 = scalar_lea.vmem %s2, %s206
        %s208 = ssub.s32 1, %s21
        %p209 = scmp.gt.s32.totalorder %s208, 0
        %s210 = scalar_select %p209, %s208, 0
        %s211 = smul.u32 256, %s210
        %s212 = ssub.s32 0, %s21
        %p213 = scmp.lt.s32.totalorder %s212, 0
        %s214 = scalar_select %p213, 0, 255
        %v215 = vld [vmem:[%s207] sm:%s214]
        %s216 = ssub.s32 0, %s21
        %v217 = vstv %s216
        %vm218 = vcmp.lt.s32.totalorder %v217, 0
        %v219 = vsel %vm218, %v9, %v215
        %s220 = smul.addr %s21, 128
        %v221 = vlaneseq
        %v222 = vand.u32 %v221, 127
        %v223 = vstv %s220
        %v224 = vadd.s32 %v222, %v223
        %vm225 = vcmp.lt.s32.totalorder %v224, 64
        %v226 = vsel %vm225, %v219, %v9
        %s228 = ssub.s32 256, 1
        %229 = vst [vmem:[#allocation8] sm:%s228] %v226
        %s230 = scalar_lea.vmem %s207, 8
        %s231 = ssub.s32 0, %s21
        %p232 = scmp.lt.s32.totalorder %s231, 0
        %s233 = scalar_select %p232, 0, 255
        %v234 = vld [vmem:[%s230] sm:%s233]
        %s235 = ssub.s32 0, %s21
        %v236 = vstv %s235
        %vm237 = vcmp.lt.s32.totalorder %v236, 0
        %v238 = vsel %vm237, %v9, %v234
        %s239 = smul.addr %s21, 128
        %v240 = vlaneseq
        %v241 = vand.u32 %v240, 127
        %v242 = vstv %s239
        %v243 = vadd.s32 %v241, %v242
        %vm244 = vcmp.lt.s32.totalorder %v243, 64
        %v245 = vsel %vm244, %v238, %v9
        %s246 = scalar_lea.vmem [#allocation8], 8
        %s248 = ssub.s32 256, 1
        %249 = vst [vmem:[%s246] sm:%s248] %v245
        %v250 = vld [vmem:[%s0] sm:$0xff]
        %v251 = vld [vmem:[%s0 + $0x8] sm:$0xff]
        %v252 = vld [vmem:[%s0 + $0x10] sm:$0xff]
        %v253 = vld [vmem:[%s0 + $0x18] sm:$0xff]
        %v254 = vld [vmem:[#allocation8] sm:$0xff]
        %v255 = vld [vmem:[#allocation8 + $0x8] sm:$0xff]
        %v256 = vld [vmem:[%s1] sm:$0xff]
        %v257 = vld [vmem:[%s1 + $0x8] sm:$0xff]
        %v258 = vld [vmem:[%s1 + $0x10] sm:$0xff]
        %v259 = vld [vmem:[%s1 + $0x18] sm:$0xff]
        %261 = vset.pattern.permute.xlu0 0
        %262 = vperm.xlu0 %261, %v256
        %v263 = vpop.permute.xlu0 %262
        %266 = vset.pattern.permute.xlu0 0
        %267 = vperm.xlu0 %266, %v257
        %v268 = vpop.permute.xlu0 %267
        %271 = vset.pattern.permute.xlu0 0
        %272 = vperm.xlu0 %271, %v258
        %v273 = vpop.permute.xlu0 %272
        %276 = vset.pattern.permute.xlu0 0
        %277 = vperm.xlu0 %276, %v259
        %v278 = vpop.permute.xlu0 %277
        %vm280 = vcmask 130048
        %v282 = vsel %vm280, %v250, 0
        %v285 = vsel %vm280, %v251, 0
        %v288 = vsel %vm280, %v252, 0
        %v291 = vsel %vm280, %v253, 0
        %293 = vmatprep.subr.mxu0 0.0
        %294 = vmatpush1.msra.mxu0 0.0
        %295 = vmatprep.subr.mxu0 0.0
        %296 = vmatpush1.msra.mxu0 0.0
        %297 = vmatprep.subr.mxu0 0.0
        %298 = vmatpush1.msra.mxu0 0.0
        %299 = vmatprep.subr.mxu0 0.0
        %300 = vmatpush1.msra.mxu0 0.0
        %301 = vmatprep.subr.mxu0 0.0
        %302 = vmatpush1.msra.mxu0 0.0
        %303 = vmatprep.subr.mxu0 0.0
        %304 = vmatpush1.msra.mxu0 0.0
        %305 = vmatprep.subr.mxu0 0.0
        %306 = vmatpush1.msra.mxu0 0.0
        %307 = vmatprep.subr.mxu0 0.0
        %308 = vmatpush1.msra.mxu0 0.0
        %309 = vmatprep.subr.mxu0 0.0
        %310 = vmatpush1.msra.mxu0 0.0
        %311 = vmatprep.subr.mxu0 0.0
        %312 = vmatpush1.msra.mxu0 0.0
        %313 = vmatprep.subr.mxu0 0.0
        %314 = vmatpush1.msra.mxu0 0.0
        %315 = vmatprep.subr.mxu0 0.0
        %316 = vmatpush1.msra.mxu0 0.0
        %317 = vmatprep.subr.mxu0 0.0
        %318 = vmatpush1.msra.mxu0 0.0
        %319 = vmatprep.subr.mxu0 0.0
        %320 = vmatpush1.msra.mxu0 0.0
        %321 = vmatprep.subr.mxu0 0.0
        %322 = vmatpush1.msra.mxu0 %v255
        %323 = vmatprep.subr.mxu0 0.0
        %324 = vmatpush1.msra.mxu0 %v254
        %325 = vmatprep.subr.mxu0 0.0
        %326 = vmatpush2.msra.mxu0 0.0
        %327 = vmatprep.subr.mxu0 0.0
        %328 = vmatpush2.msra.mxu0 0.0
        %329 = vmatprep.subr.mxu0 0.0
        %330 = vmatpush2.msra.mxu0 0.0
        %331 = vmatprep.subr.mxu0 0.0
        %332 = vmatpush2.msra.mxu0 0.0
        %333 = vmatprep.subr.mxu0 0.0
        %334 = vmatpush2.msra.mxu0 0.0
        %335 = vmatprep.subr.mxu0 0.0
        %336 = vmatpush2.msra.mxu0 0.0
        %337 = vmatprep.subr.mxu0 0.0
        %338 = vmatpush2.msra.mxu0 0.0
        %339 = vmatprep.subr.mxu0 0.0
        %340 = vmatpush2.msra.mxu0 0.0
        %341 = vmatprep.subr.mxu0 0.0
        %342 = vmatpush2.msra.mxu0 0.0
        %343 = vmatprep.subr.mxu0 0.0
        %344 = vmatpush2.msra.mxu0 0.0
        %345 = vmatprep.subr.mxu0 0.0
        %346 = vmatpush2.msra.mxu0 0.0
        %347 = vmatprep.subr.mxu0 0.0
        %348 = vmatpush2.msra.mxu0 0.0
        %349 = vmatprep.subr.mxu0 0.0
        %350 = vmatpush2.msra.mxu0 0.0
        %351 = vmatprep.subr.mxu0 0.0
        %352 = vmatpush2.msra.mxu0 0.0
        %353 = vmatprep.subr.mxu0 0.0
        %354 = vmatpush2.msra.mxu0 0.0
        %355 = vmatprep.subr.mxu0 0.0
        %356 = vmatpush2.msra.mxu0 0.0
        %357 = vmatprep.mubr.f32.mxu0 0.0
        %358 = vmatmul.mubr.f32.gmra.mxu0 %v282
        %v359 = vpop.f32.mrf.mxu0
        %v360 = vadd.f32 %v263, %v359
        %v361 = vpop.f32.mrf.mxu0
        %362 = vmatprep.mubr.f32.mxu0 0.0
        %363 = vmatmul.mubr.f32.gmra.mxu0 %v285
        %v364 = vpop.f32.mrf.mxu0
        %v365 = vadd.f32 %v268, %v364
        %v366 = vpop.f32.mrf.mxu0
        %367 = vmatprep.mubr.f32.mxu0 0.0
        %368 = vmatmul.mubr.f32.gmra.mxu0 %v288
        %v369 = vpop.f32.mrf.mxu0
        %v370 = vadd.f32 %v273, %v369
        %v371 = vpop.f32.mrf.mxu0
        %372 = vmatprep.mubr.f32.mxu0 0.0
        %373 = vmatmul.mubr.f32.gmra.mxu0 %v291
        %v374 = vpop.f32.mrf.mxu0
        %v375 = vadd.f32 %v278, %v374
        %v376 = vpop.f32.mrf.mxu0
        %377 = vdwg.mxu0
        %378 = vst [vmem:[%s195] sm:$0xff] %v360
        %379 = vst [vmem:[%s195 + $0x8] sm:$0xff] %v365
        %380 = vst [vmem:[%s195 + $0x10] sm:$0xff] %v370
        %381 = vst [vmem:[%s195 + $0x18] sm:$0xff] %v375
        %s382 = sand.u32 %s108, 1
        %s383 = sand.u32 %s108, 1
        %s384 = smul.addr %s383, 32
        %s385 = scalar_lea.vmem [#allocation7], %s384
        // Predicated region
        $region33: #{patch_merging.4} parent=31 // pred_check
          %p386 = pneg %p118
        $region34: #{patch_merging.4} parent=31 // pred_check_branch
          %388 = sbr.rel (%p386) target = $region36
        $region35: #{patch_merging.4} parent=31 // pred_region
          %s389 = smul.addr %s20, 8
          %s390 = sadd.s32 %s21, %s389
          %s391 = smul.addr %s390, 8
          %s392 = scalar_lea.vmem %s4, %s391
          // Predicated region
          $region37: #{patch_merging.4} parent=35 // pred_check
            _
          $region38: #{patch_merging.4} parent=35 // pred_check_branch
            %394 = sbr.rel (0) target = $region40
          $region39: #{patch_merging.4} parent=35 // pred_region
            // Predicated region
            $region41: #{patch_merging.4} parent=39 // pred_check
              _
            $region42: #{patch_merging.4} parent=39 // pred_check_branch
              %396 = sbr.rel (0) target = $region44
            $region43: #{patch_merging.4} parent=39 // pred_region
              // Predicated region
              $region56: #{patch_merging.4} parent=43 // pred_check
                _
              $region57: #{patch_merging.4} parent=43 // pred_check_branch
                %418 = sbr.rel (0) target = $region59
              $region58: #{patch_merging.4} parent=43 // pred_region
                loop: start=0, step=1, limit=1
                $region60: #{patch_merging.4} parent=58 // loop_pre_header
                  _
                $region61: #{patch_merging.4} parent=58 // loop_header
                  %s420 = sphi 0, %s424
                  %p421 = scmp.ge.s32.totalorder %s420, 1
                  %s425 = sphi %s385, %s385
                  %s426 = sphi %s392, %s392
                $region62: #{patch_merging.4} parent=58 // loop_header_branch
                  %423 = sbr.rel (%p421) target = $region66
                $region63: #{patch_merging.4} parent=58 // loop_body
                  %v427 = vld [vmem:[%s425] sm:$0xff]
                  %428 = vst [vmem:[%s426] sm:$0xff] %v427
                  %v429 = vld [vmem:[%s425 + $0x8] sm:$0xff]
                  %430 = vst [vmem:[%s426 + $0x10] sm:$0xff] %v429
                  %v431 = vld [vmem:[%s425 + $0x10] sm:$0xff]
                  %432 = vst [vmem:[%s426 + $0x20] sm:$0xff] %v431
                  %v433 = vld [vmem:[%s425 + $0x18] sm:$0xff]
                  %434 = vst [vmem:[%s426 + $0x30] sm:$0xff] %v433
                $region64: #{patch_merging.4} parent=58 // loop_footer
                  %s424 = sadd.s32 1, %s420
                $region65: #{patch_merging.4} parent=58 // loop_footer_branch
                  %419 = sbr.rel target = $region61
                $region66: #{patch_merging.4} parent=58 // loop_exit
                  _
              $region59: #{patch_merging.4} parent=43 // pred_fallthru
                _
              // Predicated region
              $region67: #{patch_merging.4} parent=43 // pred_check
                _
              $region68: #{patch_merging.4} parent=43 // pred_check_branch
                %436 = sbr.rel target = $region70
              $region69: #{patch_merging.4} parent=43 // pred_region
                _
              $region70: #{patch_merging.4} parent=43 // pred_fallthru
                _
            $region44: #{patch_merging.4} parent=39 // pred_fallthru
              _
            // Predicated region
            $region45: #{patch_merging.4} parent=39 // pred_check
              _
            $region46: #{patch_merging.4} parent=39 // pred_check_branch
              %398 = sbr.rel target = $region48
            $region47: #{patch_merging.4} parent=39 // pred_region
              %s400 = ssub.s32 256, 1
              loop: start=0, step=1, limit=1
              $region49: #{patch_merging.4} parent=47 // loop_pre_header
                _
              $region50: #{patch_merging.4} parent=47 // loop_header
                %s402 = sphi 0, %s406
                %p403 = scmp.ge.s32.totalorder %s402, 1
                %s407 = sphi %s385, %s385
                %s408 = sphi %s392, %s392
              $region51: #{patch_merging.4} parent=47 // loop_header_branch
                %405 = sbr.rel (%p403) target = $region55
              $region52: #{patch_merging.4} parent=47 // loop_body
                %v409 = vld [vmem:[%s407] sm:%s400]
                %410 = vst [vmem:[%s408] sm:%s400] %v409
                %v411 = vld [vmem:[%s407 + $0x8] sm:%s400]
                %412 = vst [vmem:[%s408 + $0x10] sm:%s400] %v411
                %v413 = vld [vmem:[%s407 + $0x10] sm:%s400]
                %414 = vst [vmem:[%s408 + $0x20] sm:%s400] %v413
                %v415 = vld [vmem:[%s407 + $0x18] sm:%s400]
                %416 = vst [vmem:[%s408 + $0x30] sm:%s400] %v415
              $region53: #{patch_merging.4} parent=47 // loop_footer
                %s406 = sadd.s32 1, %s402
              $region54: #{patch_merging.4} parent=47 // loop_footer_branch
                %401 = sbr.rel target = $region50
              $region55: #{patch_merging.4} parent=47 // loop_exit
                _
            $region48: #{patch_merging.4} parent=39 // pred_fallthru
              _
          $region40: #{patch_merging.4} parent=35 // pred_fallthru
            _
          %437 = vnop
        $region36: #{patch_merging.4} parent=31 // pred_fallthru
          _
      $region32: #{patch_merging.4} parent=5 // pred_fallthru
        _
      %p438 = scmp.le.s32.totalorder 2, %s11
      // Predicated region
      $region71: #{patch_merging.4} parent=5 // pred_check
        %p439 = pneg %p438
      $region72: #{patch_merging.4} parent=5 // pred_check_branch
        %441 = sbr.rel (%p439) target = $region74
      $region73: #{patch_merging.4} parent=5 // pred_region
        %s442 = ssub.s32 %s11, 2
        // Predicated region
        $region75: #{patch_merging.4} parent=73 // pred_check
          %p443 = pneg %p124
        $region76: #{patch_merging.4} parent=73 // pred_check_branch
          %445 = sbr.rel (%p443) target = $region78
        $region77: #{patch_merging.4} parent=73 // pred_region
          %s446 = sand.u32 %s109, 1
          %s447 = sand.u32 %s109, 1
          %s448 = smul.addr %s447, 32
          %s449 = scalar_lea.vmem [#allocation7], %s448
        $region78: #{patch_merging.4} parent=73 // pred_fallthru
          _
      $region74: #{patch_merging.4} parent=5 // pred_fallthru
        _
    $region6: #{patch_merging.4} parent=1 // loop_footer
      %s15 = sadd.s32 1, %s11
    $region7: #{patch_merging.4} parent=1 // loop_footer_branch
      %10 = sbr.rel target = $region3
    $region8: #{patch_merging.4} parent=1 // loop_exit
      _

</llo_original>
